<compile_context>
chip_gen: v6e
topology: v6e:2x2x1
jax: 0.10.0
libtpu: 0.0.40
codegen_flags: <defaults>
</compile_context>

<pallas_src>
import math

import jax
import jax.numpy as jnp
from jax.experimental import pallas as pl
from jax.experimental.pallas import tpu as pltpu

# ---- model config (small, deterministic) ----
BATCH = 2
SEQ = 8
HIDDEN = 32
INTERMEDIATE = 32          # must equal HIDDEN (see note above)
N_HEADS = 2
HEAD = HIDDEN // N_HEADS
LN_EPS = 1e-12
INV_SQRT_HEAD = 1.0 / math.sqrt(HEAD)

assert INTERMEDIATE == HIDDEN, "reference FFN residual requires inner == hidden"


def _layer_norm(y, gamma, beta, eps):
    mu = jnp.mean(y, axis=-1, keepdims=True)
    var = jnp.mean((y - mu) ** 2, axis=-1, keepdims=True)
    return (y - mu) * jax.lax.rsqrt(var + eps) * gamma + beta


def _gelu_erf(x):
    # x * 0.5 * (1 + erf(x / sqrt(2)))  -- matches the PyTorch reference gelu
    return x * 0.5 * (1.0 + jax.lax.erf(x / math.sqrt(2.0)))


def transformer_layer_kernel(x_ref, mask_ref, wqkv_ref, bqkv_ref,
                             wpack_ref, vec_ref, out_ref):
    # x:     (R, H)    R = B*S rows, batch-major
    # mask:  (R, R)    block-diagonal additive mask (-1e9 cross-batch)
    # wqkv:  (H, 3H)   [Wq * 1/sqrt(head) | Wk | Wv]
    # bqkv:  (1, 3H)
    # wpack: (3H, H)   rows = [Wo ; W1 ; W2]
    # vec:   (8, H)    rows = [bo, b1, b2, ln1_g, ln1_b, ln2_g, ln2_b, pad]
    x = x_ref[...]
    mask = mask_ref[...]
    wpack = wpack_ref[...]
    vecs = vec_ref[...]

    bo, b1, b2 = vecs[0:1, :], vecs[1:2, :], vecs[2:3, :]
    ln1_g, ln1_b = vecs[3:4, :], vecs[4:5, :]
    ln2_g, ln2_b = vecs[5:6, :], vecs[6:7, :]

    # ---- fused QKV projection (one wide MXU matmul) ----
    qkv = jnp.dot(x, wqkv_ref[...], preferred_element_type=jnp.float32) + bqkv_ref[...]

    # ---- multi-head self-attention ----
    # All batches handled at once (block-diagonal mask keeps them independent).
    # Static 2-iteration head unroll; every op inside is 2-D; no concatenate:
    # context @ Wo == sum_h ctx_h @ Wo[h*HEAD:(h+1)*HEAD].
    attn = jnp.zeros_like(x)
    for h in range(N_HEADS):
        lo = h * HEAD
        q_h = qkv[:, lo:lo + HEAD]                              # (R, HEAD), pre-scaled
        k_h = qkv[:, HIDDEN + lo:HIDDEN + lo + HEAD]            # (R, HEAD)
        v_h = qkv[:, 2 * HIDDEN + lo:2 * HIDDEN + lo + HEAD]    # (R, HEAD)

        s = jnp.dot(q_h, k_h.T, preferred_element_type=jnp.float32) + mask  # (R, R)
        m = jnp.max(s, axis=-1, keepdims=True)
        p = jnp.exp(s - m)
        p = p * (1.0 / jnp.sum(p, axis=-1, keepdims=True))
        # attn_dropout: identity in eval mode
        ctx_h = jnp.dot(p, v_h, preferred_element_type=jnp.float32)         # (R, HEAD)
        attn = attn + jnp.dot(ctx_h, wpack[lo:lo + HEAD, :],
                              preferred_element_type=jnp.float32)
    attn = attn + bo
    # out_dropout: identity in eval mode
    attn = _layer_norm(attn + x, ln1_g, ln1_b, LN_EPS)

    # ---- point-wise feed forward ----
    w1 = wpack[HIDDEN:2 * HIDDEN, :]
    w2 = wpack[2 * HIDDEN:3 * HIDDEN, :]
    h1 = _gelu_erf(jnp.dot(attn, w1, preferred_element_type=jnp.float32) + b1)
    h2 = jnp.dot(h1, w2, preferred_element_type=jnp.float32) + b2
    # hidden dropout: identity in eval mode
    out_ref[...] = _layer_norm(h2 + attn, ln2_g, ln2_b, LN_EPS).astype(out_ref.dtype)


def transformer_layer(x, mask, params):
    B, S, H = x.shape
    R = B * S

    # ---- wrapper-side packing (free XLA ops, done once) ----
    wq = params["wq"] * INV_SQRT_HEAD          # fold attention scale into Q
    bq = params["bq"] * INV_SQRT_HEAD
    wqkv = jnp.concatenate([wq, params["wk"], params["wv"]], axis=1)     # (H, 3H)
    bqkv = jnp.concatenate([bq, params["bk"], params["bv"]], axis=1)     # (1, 3H)
    wpack = jnp.concatenate([params["wo"], params["w1"], params["w2"]], axis=0)  # (3H, H)
    vecs = jnp.concatenate([params["bo"], params["b1"], params["b2"],
                            params["ln1_g"], params["ln1_b"],
                            params["ln2_g"], params["ln2_b"],
                            jnp.zeros((1, H), x.dtype)], axis=0)         # (8, H)

    x2d = x.reshape(R, H)

    # block-diagonal additive mask: same-batch blocks get the original mask,
    # cross-batch entries get -1e9 (exp underflows to exactly 0).
    mask2 = mask[:, 0]                                                   # (B, S, S)
    same_batch = (jnp.eye(B, dtype=jnp.float32) > 0)[:, None, :, None]   # (B,1,B,1)
    mask_bd = jnp.where(same_batch, mask2[:, :, None, :],
                        jnp.float32(-1e9)).reshape(R, R)                 # (R, R)

    vmem = pltpu.MemorySpace.VMEM
    out2d = pl.pallas_call(
        transformer_layer_kernel,
        out_shape=jax.ShapeDtypeStruct((R, H), x.dtype),
        in_specs=[pl.BlockSpec(memory_space=vmem)] * 6,
        out_specs=pl.BlockSpec(memory_space=vmem),
    )(x2d, mask_bd, wqkv, bqkv, wpack, vecs)
    return out2d.reshape(B, S, H)


# ---- pure-JAX reference (matches the PyTorch module; uses raw params) ----
def transformer_layer_ref(x, mask, p):
    x = x.astype(jnp.float32)
    q = x @ p["wq"] + p["bq"]
    k = x @ p["wk"] + p["bk"]
    v = x @ p["wv"] + p["bv"]

    def split(t):  # (B,S,H) -> (B,nh,S,hd)
        B, S, _ = t.shape
        return t.reshape(B, S, N_HEADS, HEAD).transpose(0, 2, 1, 3)

    qh, kh, vh = split(q), split(k), split(v)
    scores = jnp.einsum("bhqd,bhkd->bhqk", qh, kh) * INV_SQRT_HEAD
    scores = scores + mask  # (B,1,S,S) broadcasts over heads
    probs = jax.nn.softmax(scores, axis=-1)
    ctx = jnp.einsum("bhqk,bhkd->bhqd", probs, vh)
    ctx = ctx.transpose(0, 2, 1, 3).reshape(x.shape)
    attn = ctx @ p["wo"] + p["bo"]
    attn = _layer_norm(attn + x, p["ln1_g"], p["ln1_b"], LN_EPS)

    h1 = _gelu_erf(attn @ p["w1"] + p["b1"])
    h2 = h1 @ p["w2"] + p["b2"]
    return _layer_norm(h2 + attn, p["ln2_g"], p["ln2_b"], LN_EPS)


def make_params(key):
    keys = jax.random.split(key, 8)
    s = 0.02
    return {
        "wq": s * jax.random.normal(keys[0], (HIDDEN, HIDDEN), jnp.float32),
        "bq": jnp.zeros((1, HIDDEN), jnp.float32),
        "wk": s * jax.random.normal(keys[1], (HIDDEN, HIDDEN), jnp.float32),
        "bk": jnp.zeros((1, HIDDEN), jnp.float32),
        "wv": s * jax.random.normal(keys[2], (HIDDEN, HIDDEN), jnp.float32),
        "bv": jnp.zeros((1, HIDDEN), jnp.float32),
        "wo": s * jax.random.normal(keys[3], (HIDDEN, HIDDEN), jnp.float32),
        "bo": jnp.zeros((1, HIDDEN), jnp.float32),
        "ln1_g": jnp.ones((1, HIDDEN), jnp.float32),
        "ln1_b": jnp.zeros((1, HIDDEN), jnp.float32),
        "w1": s * jax.random.normal(keys[4], (HIDDEN, INTERMEDIATE), jnp.float32),
        "b1": jnp.zeros((1, INTERMEDIATE), jnp.float32),
        "w2": s * jax.random.normal(keys[5], (INTERMEDIATE, INTERMEDIATE), jnp.float32),
        "b2": jnp.zeros((1, INTERMEDIATE), jnp.float32),
        "ln2_g": jnp.ones((1, HIDDEN), jnp.float32),
        "ln2_b": jnp.zeros((1, HIDDEN), jnp.float32),
    }


if __name__ == "__main__":
    key = jax.random.PRNGKey(0)
    kx, kmask, kparams = jax.random.split(key, 3)

    x = jax.random.normal(kx, (BATCH, SEQ, HIDDEN), jnp.float32)
    # additive attention mask: 0 where attended, -10000 where masked (like BERT)
    keep = (jax.random.uniform(kmask, (BATCH, 1, SEQ, SEQ)) > 0.1).astype(jnp.float32)
    mask = (1.0 - keep) * -10000.0

    params = make_params(kparams)

    out = transformer_layer(x, mask, params)
    out = jax.block_until_ready(out)

    ref = transformer_layer_ref(x, mask, params)
    assert out.shape == (BATCH, SEQ, HIDDEN)
    assert jnp.allclose(out, ref, atol=1e-4, rtol=1e-4), "mismatch vs JAX reference"

    print("KERNEL_OK")
</pallas_src>

<mosaic_0001>
module attributes {stable_mosaic.version = 11 : i64} {
  func.func @transformer_layer_kernel(%arg0: memref<16x32xf32, #tpu.memory_space<vmem>>, %arg1: memref<16x16xf32, #tpu.memory_space<vmem>>, %arg2: memref<32x96xf32, #tpu.memory_space<vmem>>, %arg3: memref<1x96xf32, #tpu.memory_space<vmem>>, %arg4: memref<96x32xf32, #tpu.memory_space<vmem>>, %arg5: memref<8x32xf32, #tpu.memory_space<vmem>>, %arg6: memref<16x32xf32, #tpu.memory_space<vmem>>) attributes {dimension_semantics = [], scalar_prefetch = 0 : i64, scratch_operands = 0 : i64, tpu.core_type = #tpu.core_type<tc>} {
    %c0 = arith.constant 0 : index
    %c0_0 = arith.constant 0 : index
    %0 = vector.load %arg0[%c0, %c0_0] : memref<16x32xf32, #tpu.memory_space<vmem>>, vector<16x32xf32>
    %c0_1 = arith.constant 0 : index
    %c0_2 = arith.constant 0 : index
    %1 = vector.load %arg1[%c0_1, %c0_2] : memref<16x16xf32, #tpu.memory_space<vmem>>, vector<16x16xf32>
    %c0_3 = arith.constant 0 : index
    %c0_4 = arith.constant 0 : index
    %2 = vector.load %arg4[%c0_3, %c0_4] : memref<96x32xf32, #tpu.memory_space<vmem>>, vector<96x32xf32>
    %c0_5 = arith.constant 0 : index
    %c0_6 = arith.constant 0 : index
    %3 = vector.load %arg5[%c0_5, %c0_6] : memref<8x32xf32, #tpu.memory_space<vmem>>, vector<8x32xf32>
    %4 = vector.extract_strided_slice %3 {offsets = [0, 0], sizes = [1, 32], strides = [1, 1]} : vector<8x32xf32> to vector<1x32xf32>
    %5 = vector.extract_strided_slice %3 {offsets = [1, 0], sizes = [1, 32], strides = [1, 1]} : vector<8x32xf32> to vector<1x32xf32>
    %6 = vector.extract_strided_slice %3 {offsets = [2, 0], sizes = [1, 32], strides = [1, 1]} : vector<8x32xf32> to vector<1x32xf32>
    %7 = vector.extract_strided_slice %3 {offsets = [3, 0], sizes = [1, 32], strides = [1, 1]} : vector<8x32xf32> to vector<1x32xf32>
    %8 = vector.extract_strided_slice %3 {offsets = [4, 0], sizes = [1, 32], strides = [1, 1]} : vector<8x32xf32> to vector<1x32xf32>
    %9 = vector.extract_strided_slice %3 {offsets = [5, 0], sizes = [1, 32], strides = [1, 1]} : vector<8x32xf32> to vector<1x32xf32>
    %10 = vector.extract_strided_slice %3 {offsets = [6, 0], sizes = [1, 32], strides = [1, 1]} : vector<8x32xf32> to vector<1x32xf32>
    %c0_7 = arith.constant 0 : index
    %c0_8 = arith.constant 0 : index
    %11 = vector.load %arg2[%c0_7, %c0_8] : memref<32x96xf32, #tpu.memory_space<vmem>>, vector<32x96xf32>
    %cst = arith.constant dense<0.000000e+00> : vector<16x96xf32>
    %12 = tpu.matmul %0, %11, %cst {dimension_numbers = #tpu.dot_dimension_numbers<[1], [0], [0], [1], [0, 0, 1, 1], [], []>} : vector<16x32xf32>, vector<32x96xf32>, vector<16x96xf32> -> vector<16x96xf32>
    %c0_9 = arith.constant 0 : index
    %c0_10 = arith.constant 0 : index
    %13 = vector.load %arg3[%c0_9, %c0_10] : memref<1x96xf32, #tpu.memory_space<vmem>>, vector<1x96xf32>
    %14 = vector.broadcast %13 : vector<1x96xf32> to vector<16x96xf32>
    %15 = arith.addf %12, %14 : vector<16x96xf32>
    %cst_11 = arith.constant 0.000000e+00 : f32
    %16 = vector.broadcast %cst_11 : f32 to vector<16x32xf32>
    %17 = vector.extract_strided_slice %15 {offsets = [0, 0], sizes = [16, 16], strides = [1, 1]} : vector<16x96xf32> to vector<16x16xf32>
    %18 = vector.extract_strided_slice %15 {offsets = [0, 32], sizes = [16, 16], strides = [1, 1]} : vector<16x96xf32> to vector<16x16xf32>
    %19 = vector.extract_strided_slice %15 {offsets = [0, 64], sizes = [16, 16], strides = [1, 1]} : vector<16x96xf32> to vector<16x16xf32>
    %20 = tpu.transpose %18, [1, 0] : vector<16x16xf32> -> vector<16x16xf32>
    %cst_12 = arith.constant dense<0.000000e+00> : vector<16x16xf32>
    %21 = tpu.matmul %17, %20, %cst_12 {dimension_numbers = #tpu.dot_dimension_numbers<[1], [0], [0], [1], [0, 0, 1, 1], [], []>} : vector<16x16xf32>, vector<16x16xf32>, vector<16x16xf32> -> vector<16x16xf32>
    %22 = arith.addf %21, %1 : vector<16x16xf32>
    %cst_13 = arith.constant dense<0xFF800000> : vector<16xf32>
    %23 = vector.multi_reduction <maximumf>, %22, %cst_13 [1] : vector<16x16xf32> to vector<16xf32>
    %24 = vector.shape_cast %23 : vector<16xf32> to vector<16x1xf32>
    %25 = vector.broadcast %24 : vector<16x1xf32> to vector<16x16xf32>
    %26 = arith.subf %22, %25 : vector<16x16xf32>
    %27 = math.exp %26 : vector<16x16xf32>
    %cst_14 = arith.constant dense<0.000000e+00> : vector<16xf32>
    %28 = vector.multi_reduction <add>, %27, %cst_14 [1] : vector<16x16xf32> to vector<16xf32>
    %29 = vector.shape_cast %28 : vector<16xf32> to vector<16x1xf32>
    %cst_15 = arith.constant 1.000000e+00 : f32
    %30 = vector.broadcast %cst_15 : f32 to vector<16x1xf32>
    %31 = arith.divf %30, %29 : vector<16x1xf32>
    %32 = vector.broadcast %31 : vector<16x1xf32> to vector<16x16xf32>
    %33 = arith.mulf %27, %32 : vector<16x16xf32>
    %cst_16 = arith.constant dense<0.000000e+00> : vector<16x16xf32>
    %34 = tpu.matmul %33, %19, %cst_16 {dimension_numbers = #tpu.dot_dimension_numbers<[1], [0], [0], [1], [0, 0, 1, 1], [], []>} : vector<16x16xf32>, vector<16x16xf32>, vector<16x16xf32> -> vector<16x16xf32>
    %35 = vector.extract_strided_slice %2 {offsets = [0, 0], sizes = [16, 32], strides = [1, 1]} : vector<96x32xf32> to vector<16x32xf32>
    %cst_17 = arith.constant dense<0.000000e+00> : vector<16x32xf32>
    %36 = tpu.matmul %34, %35, %cst_17 {dimension_numbers = #tpu.dot_dimension_numbers<[1], [0], [0], [1], [0, 0, 1, 1], [], []>} : vector<16x16xf32>, vector<16x32xf32>, vector<16x32xf32> -> vector<16x32xf32>
    %37 = arith.addf %16, %36 : vector<16x32xf32>
    %38 = vector.extract_strided_slice %15 {offsets = [0, 16], sizes = [16, 16], strides = [1, 1]} : vector<16x96xf32> to vector<16x16xf32>
    %39 = vector.extract_strided_slice %15 {offsets = [0, 48], sizes = [16, 16], strides = [1, 1]} : vector<16x96xf32> to vector<16x16xf32>
    %40 = vector.extract_strided_slice %15 {offsets = [0, 80], sizes = [16, 16], strides = [1, 1]} : vector<16x96xf32> to vector<16x16xf32>
    %41 = tpu.transpose %39, [1, 0] : vector<16x16xf32> -> vector<16x16xf32>
    %cst_18 = arith.constant dense<0.000000e+00> : vector<16x16xf32>
    %42 = tpu.matmul %38, %41, %cst_18 {dimension_numbers = #tpu.dot_dimension_numbers<[1], [0], [0], [1], [0, 0, 1, 1], [], []>} : vector<16x16xf32>, vector<16x16xf32>, vector<16x16xf32> -> vector<16x16xf32>
    %43 = arith.addf %42, %1 : vector<16x16xf32>
    %cst_19 = arith.constant dense<0xFF800000> : vector<16xf32>
    %44 = vector.multi_reduction <maximumf>, %43, %cst_19 [1] : vector<16x16xf32> to vector<16xf32>
    %45 = vector.shape_cast %44 : vector<16xf32> to vector<16x1xf32>
    %46 = vector.broadcast %45 : vector<16x1xf32> to vector<16x16xf32>
    %47 = arith.subf %43, %46 : vector<16x16xf32>
    %48 = math.exp %47 : vector<16x16xf32>
    %cst_20 = arith.constant dense<0.000000e+00> : vector<16xf32>
    %49 = vector.multi_reduction <add>, %48, %cst_20 [1] : vector<16x16xf32> to vector<16xf32>
    %50 = vector.shape_cast %49 : vector<16xf32> to vector<16x1xf32>
    %cst_21 = arith.constant 1.000000e+00 : f32
    %51 = vector.broadcast %cst_21 : f32 to vector<16x1xf32>
    %52 = arith.divf %51, %50 : vector<16x1xf32>
    %53 = vector.broadcast %52 : vector<16x1xf32> to vector<16x16xf32>
    %54 = arith.mulf %48, %53 : vector<16x16xf32>
    %cst_22 = arith.constant dense<0.000000e+00> : vector<16x16xf32>
    %55 = tpu.matmul %54, %40, %cst_22 {dimension_numbers = #tpu.dot_dimension_numbers<[1], [0], [0], [1], [0, 0, 1, 1], [], []>} : vector<16x16xf32>, vector<16x16xf32>, vector<16x16xf32> -> vector<16x16xf32>
    %56 = vector.extract_strided_slice %2 {offsets = [16, 0], sizes = [16, 32], strides = [1, 1]} : vector<96x32xf32> to vector<16x32xf32>
    %cst_23 = arith.constant dense<0.000000e+00> : vector<16x32xf32>
    %57 = tpu.matmul %55, %56, %cst_23 {dimension_numbers = #tpu.dot_dimension_numbers<[1], [0], [0], [1], [0, 0, 1, 1], [], []>} : vector<16x16xf32>, vector<16x32xf32>, vector<16x32xf32> -> vector<16x32xf32>
    %58 = arith.addf %37, %57 : vector<16x32xf32>
    %59 = vector.broadcast %4 : vector<1x32xf32> to vector<16x32xf32>
    %60 = arith.addf %58, %59 : vector<16x32xf32>
    %61 = arith.addf %60, %0 : vector<16x32xf32>
    %cst_24 = arith.constant dense<0.000000e+00> : vector<16xf32>
    %62 = vector.multi_reduction <add>, %61, %cst_24 [1] : vector<16x32xf32> to vector<16xf32>
    %63 = vector.shape_cast %62 : vector<16xf32> to vector<16x1xf32>
    %cst_25 = arith.constant 3.200000e+01 : f32
    %64 = vector.broadcast %cst_25 : f32 to vector<16x1xf32>
    %65 = arith.divf %63, %64 : vector<16x1xf32>
    %66 = vector.broadcast %65 : vector<16x1xf32> to vector<16x32xf32>
    %67 = arith.subf %61, %66 : vector<16x32xf32>
    %68 = arith.mulf %67, %67 : vector<16x32xf32>
    %cst_26 = arith.constant dense<0.000000e+00> : vector<16xf32>
    %69 = vector.multi_reduction <add>, %68, %cst_26 [1] : vector<16x32xf32> to vector<16xf32>
    %70 = vector.shape_cast %69 : vector<16xf32> to vector<16x1xf32>
    %cst_27 = arith.constant 3.200000e+01 : f32
    %71 = vector.broadcast %cst_27 : f32 to vector<16x1xf32>
    %72 = arith.divf %70, %71 : vector<16x1xf32>
    %73 = vector.broadcast %65 : vector<16x1xf32> to vector<16x32xf32>
    %74 = arith.subf %61, %73 : vector<16x32xf32>
    %cst_28 = arith.constant 9.99999996E-13 : f32
    %75 = vector.broadcast %cst_28 : f32 to vector<16x1xf32>
    %76 = arith.addf %72, %75 : vector<16x1xf32>
    %77 = math.rsqrt %76 : vector<16x1xf32>
    %78 = vector.broadcast %77 : vector<16x1xf32> to vector<16x32xf32>
    %79 = arith.mulf %74, %78 : vector<16x32xf32>
    %80 = vector.broadcast %7 : vector<1x32xf32> to vector<16x32xf32>
    %81 = arith.mulf %79, %80 : vector<16x32xf32>
    %82 = vector.broadcast %8 : vector<1x32xf32> to vector<16x32xf32>
    %83 = arith.addf %81, %82 : vector<16x32xf32>
    %84 = vector.extract_strided_slice %2 {offsets = [32, 0], sizes = [32, 32], strides = [1, 1]} : vector<96x32xf32> to vector<32x32xf32>
    %85 = vector.extract_strided_slice %2 {offsets = [64, 0], sizes = [32, 32], strides = [1, 1]} : vector<96x32xf32> to vector<32x32xf32>
    %cst_29 = arith.constant dense<0.000000e+00> : vector<16x32xf32>
    %86 = tpu.matmul %83, %84, %cst_29 {dimension_numbers = #tpu.dot_dimension_numbers<[1], [0], [0], [1], [0, 0, 1, 1], [], []>} : vector<16x32xf32>, vector<32x32xf32>, vector<16x32xf32> -> vector<16x32xf32>
    %87 = vector.broadcast %5 : vector<1x32xf32> to vector<16x32xf32>
    %88 = arith.addf %86, %87 : vector<16x32xf32>
    %cst_30 = arith.constant 5.000000e-01 : f32
    %89 = vector.broadcast %cst_30 : f32 to vector<16x32xf32>
    %90 = arith.mulf %88, %89 : vector<16x32xf32>
    %cst_31 = arith.constant 1.41421354 : f32
    %91 = vector.broadcast %cst_31 : f32 to vector<16x32xf32>
    %92 = arith.divf %88, %91 : vector<16x32xf32>
    %93 = math.erf %92 : vector<16x32xf32>
    %cst_32 = arith.constant 1.000000e+00 : f32
    %94 = vector.broadcast %cst_32 : f32 to vector<16x32xf32>
    %95 = arith.addf %94, %93 : vector<16x32xf32>
    %96 = arith.mulf %90, %95 : vector<16x32xf32>
    %cst_33 = arith.constant dense<0.000000e+00> : vector<16x32xf32>
    %97 = tpu.matmul %96, %85, %cst_33 {dimension_numbers = #tpu.dot_dimension_numbers<[1], [0], [0], [1], [0, 0, 1, 1], [], []>} : vector<16x32xf32>, vector<32x32xf32>, vector<16x32xf32> -> vector<16x32xf32>
    %98 = vector.broadcast %6 : vector<1x32xf32> to vector<16x32xf32>
    %99 = arith.addf %97, %98 : vector<16x32xf32>
    %100 = arith.addf %99, %83 : vector<16x32xf32>
    %cst_34 = arith.constant dense<0.000000e+00> : vector<16xf32>
    %101 = vector.multi_reduction <add>, %100, %cst_34 [1] : vector<16x32xf32> to vector<16xf32>
    %102 = vector.shape_cast %101 : vector<16xf32> to vector<16x1xf32>
    %cst_35 = arith.constant 3.200000e+01 : f32
    %103 = vector.broadcast %cst_35 : f32 to vector<16x1xf32>
    %104 = arith.divf %102, %103 : vector<16x1xf32>
    %105 = vector.broadcast %104 : vector<16x1xf32> to vector<16x32xf32>
    %106 = arith.subf %100, %105 : vector<16x32xf32>
    %107 = arith.mulf %106, %106 : vector<16x32xf32>
    %cst_36 = arith.constant dense<0.000000e+00> : vector<16xf32>
    %108 = vector.multi_reduction <add>, %107, %cst_36 [1] : vector<16x32xf32> to vector<16xf32>
    %109 = vector.shape_cast %108 : vector<16xf32> to vector<16x1xf32>
    %cst_37 = arith.constant 3.200000e+01 : f32
    %110 = vector.broadcast %cst_37 : f32 to vector<16x1xf32>
    %111 = arith.divf %109, %110 : vector<16x1xf32>
    %112 = vector.broadcast %104 : vector<16x1xf32> to vector<16x32xf32>
    %113 = arith.subf %100, %112 : vector<16x32xf32>
    %cst_38 = arith.constant 9.99999996E-13 : f32
    %114 = vector.broadcast %cst_38 : f32 to vector<16x1xf32>
    %115 = arith.addf %111, %114 : vector<16x1xf32>
    %116 = math.rsqrt %115 : vector<16x1xf32>
    %117 = vector.broadcast %116 : vector<16x1xf32> to vector<16x32xf32>
    %118 = arith.mulf %113, %117 : vector<16x32xf32>
    %119 = vector.broadcast %9 : vector<1x32xf32> to vector<16x32xf32>
    %120 = arith.mulf %118, %119 : vector<16x32xf32>
    %121 = vector.broadcast %10 : vector<1x32xf32> to vector<16x32xf32>
    %122 = arith.addf %120, %121 : vector<16x32xf32>
    %c0_39 = arith.constant 0 : index
    %c0_40 = arith.constant 0 : index
    %123 = vector.load %arg6[%c0_39, %c0_40] : memref<16x32xf32, #tpu.memory_space<vmem>>, vector<16x32xf32>
    tpu.vector_store %arg6[%c0_39, %c0_40], %122 {strides = array<i32>} : memref<16x32xf32, #tpu.memory_space<vmem>>, vector<16x32xf32>,
    return
  }
}

</mosaic_0001>

<llo_original>
// kernel: tpu_custom_call.1
$region0: #{tpu_custom_call.1}
  #allocation0 [shape = 'u32[]', space=smem, size = 0x4, offset = 0x4, fixed_abs, tag = 'smem constant byte address 0x4 - core index']
  #allocation1 [shape = 'u32[144,128]{1,0:T(1,128)}', space=vmem, size = 0x12000, scoped, tag = 'internal scratch']
  %s0 = inlined_call_operand.vmem [shape: f32[16,32], index: 0, kind: input, shape index: {}]
  %s1 = inlined_call_operand.vmem [shape: f32[16,16], index: 1, kind: input, shape index: {}]
  %s2 = inlined_call_operand.vmem [shape: f32[32,96], index: 2, kind: input, shape index: {}]
  %s3 = inlined_call_operand.vmem [shape: f32[1,96], index: 3, kind: input, shape index: {}]
  %s4 = inlined_call_operand.vmem [shape: f32[96,32], index: 4, kind: input, shape index: {}]
  %s5 = inlined_call_operand.vmem [shape: f32[8,32], index: 5, kind: input, shape index: {}]
  %s6 = inlined_call_operand.hbm [shape: f32[16,32], index: 6, kind: output, shape index: {}]
  %s7 = sld [smem:[#allocation0]]
  $region34: #{tpu_custom_call.1} parent=0
    _
  %s9 = ssub.s32 1, %s7
  %s10 = scalar_select 0, %s9, %s7
  $region1: #{tpu_custom_call.1} parent=0
    #allocation2 [shape = 'u8[8192]{0}', space=vmem, size = 0x2000, scoped, tag = 'output window, operand 0, single buffered']
    #allocation3 [shape = 's32[1]{0}', space=sflag, size = 0x4, scoped, tag = 'scoped memory for tpu_custom_call.1']
    %11 = vsyncpa [#allocation3], 0
    // Predicated region
    $region2: #{tpu_custom_call.1} parent=1 // pred_check
      _
    $region3: #{tpu_custom_call.1} parent=1 // pred_check_branch
      %13 = sbr.rel (0) target = $region5
    $region4: #{tpu_custom_call.1} parent=1 // pred_region
      _
    $region5: #{tpu_custom_call.1} parent=1 // pred_fallthru
      _
    // Predicated region
    $region6: #{tpu_custom_call.1} parent=1 // pred_check
      _
    $region7: #{tpu_custom_call.1} parent=1 // pred_check_branch
      %15 = sbr.rel (0) target = $region9
    $region8: #{tpu_custom_call.1} parent=1 // pred_region
      _
    $region9: #{tpu_custom_call.1} parent=1 // pred_fallthru
      _
    // Predicated region
    $region10: #{tpu_custom_call.1} parent=1 // pred_check
      _
    $region11: #{tpu_custom_call.1} parent=1 // pred_check_branch
      %17 = sbr.rel (0) target = $region13
    $region12: #{tpu_custom_call.1} parent=1 // pred_region
      _
    $region13: #{tpu_custom_call.1} parent=1 // pred_fallthru
      _
    // Predicated region
    $region14: #{tpu_custom_call.1} parent=1 // pred_check
      _
    $region15: #{tpu_custom_call.1} parent=1 // pred_check_branch
      %19 = sbr.rel (0) target = $region17
    $region16: #{tpu_custom_call.1} parent=1 // pred_region
      _
    $region17: #{tpu_custom_call.1} parent=1 // pred_fallthru
      _
    // Predicated region
    $region18: #{tpu_custom_call.1} parent=1 // pred_check
      _
    $region19: #{tpu_custom_call.1} parent=1 // pred_check_branch
      %21 = sbr.rel (0) target = $region21
    $region20: #{tpu_custom_call.1} parent=1 // pred_region
      _
    $region21: #{tpu_custom_call.1} parent=1 // pred_fallthru
      _
    // Predicated region
    $region22: #{tpu_custom_call.1} parent=1 // pred_check
      _
    $region23: #{tpu_custom_call.1} parent=1 // pred_check_branch
      %23 = sbr.rel (0) target = $region25
    $region24: #{tpu_custom_call.1} parent=1 // pred_region
      _
    $region25: #{tpu_custom_call.1} parent=1 // pred_fallthru
      _
    %v24 = vld [vmem:[%s0] sm:$0xff]
    %v25 = vld [vmem:[%s0 + $0x8] sm:$0xff]
    %v26 = vld [vmem:[%s1] sm:$0xff]
    %v27 = vld [vmem:[%s1 + $0x8] sm:$0xff]
    %v28 = vld [vmem:[%s4] sm:$0xff]
    %v29 = vld [vmem:[%s4 + $0x8] sm:$0xff]
    %v30 = vld [vmem:[%s4 + $0x10] sm:$0xff]
    %v31 = vld [vmem:[%s4 + $0x18] sm:$0xff]
    %v32 = vld [vmem:[%s4 + $0x20] sm:$0xff]
    %v33 = vld [vmem:[%s4 + $0x28] sm:$0xff]
    %v34 = vld [vmem:[%s4 + $0x30] sm:$0xff]
    %v35 = vld [vmem:[%s4 + $0x38] sm:$0xff]
    %v36 = vld [vmem:[%s4 + $0x40] sm:$0xff]
    %v37 = vld [vmem:[%s4 + $0x48] sm:$0xff]
    %v38 = vld [vmem:[%s4 + $0x50] sm:$0xff]
    %v39 = vld [vmem:[%s4 + $0x58] sm:$0xff]
    %v40 = vld [vmem:[%s5] sm:$0xff]
    %v41 = vld [vmem:[%s2] sm:$0xff]
    %v42 = vld [vmem:[%s2 + $0x8] sm:$0xff]
    %v43 = vld [vmem:[%s2 + $0x10] sm:$0xff]
    %v44 = vld [vmem:[%s2 + $0x18] sm:$0xff]
    %v45 = vld [vmem:[%s3] sm:$0x1]
    %v47 = vlaneseq
    %v48 = vshrl.u32 %v47, 7
    %v49 = vsub.s32 0, %v48
    %v50 = vrot.slane %v45, %v49
    %vm52 = vcmask 261120
    %v54 = vsel %vm52, %v24, 0
    %v57 = vsel %vm52, %v25, 0
    %59 = vmatprep.subr.mxu0 0.0
    %60 = vmatpush1.msra.mxu0 0.0
    %61 = vmatprep.subr.mxu0 0.0
    %62 = vmatpush1.msra.mxu0 0.0
    %63 = vmatprep.subr.mxu0 0.0
    %64 = vmatpush1.msra.mxu0 0.0
    %65 = vmatprep.subr.mxu0 0.0
    %66 = vmatpush1.msra.mxu0 0.0
    %67 = vmatprep.subr.mxu0 0.0
    %68 = vmatpush1.msra.mxu0 0.0
    %69 = vmatprep.subr.mxu0 0.0
    %70 = vmatpush1.msra.mxu0 0.0
    %71 = vmatprep.subr.mxu0 0.0
    %72 = vmatpush1.msra.mxu0 0.0
    %73 = vmatprep.subr.mxu0 0.0
    %74 = vmatpush1.msra.mxu0 0.0
    %75 = vmatprep.subr.mxu0 0.0
    %76 = vmatpush1.msra.mxu0 0.0
    %77 = vmatprep.subr.mxu0 0.0
    %78 = vmatpush1.msra.mxu0 0.0
    %79 = vmatprep.subr.mxu0 0.0
    %80 = vmatpush1.msra.mxu0 0.0
    %81 = vmatprep.subr.mxu0 0.0
    %82 = vmatpush1.msra.mxu0 0.0
    %83 = vmatprep.subr.mxu0 0.0
    %84 = vmatpush1.msra.mxu0 %v44
    %85 = vmatprep.subr.mxu0 0.0
    %86 = vmatpush1.msra.mxu0 %v43
    %87 = vmatprep.subr.mxu0 0.0
    %88 = vmatpush1.msra.mxu0 %v42
    %89 = vmatprep.subr.mxu0 0.0
    %90 = vmatpush1.msra.mxu0 %v41
    %91 = vmatprep.subr.mxu0 0.0
    %92 = vmatpush2.msra.mxu0 0.0
    %93 = vmatprep.subr.mxu0 0.0
    %94 = vmatpush2.msra.mxu0 0.0
    %95 = vmatprep.subr.mxu0 0.0
    %96 = vmatpush2.msra.mxu0 0.0
    %97 = vmatprep.subr.mxu0 0.0
    %98 = vmatpush2.msra.mxu0 0.0
    %99 = vmatprep.subr.mxu0 0.0
    %100 = vmatpush2.msra.mxu0 0.0
    %101 = vmatprep.subr.mxu0 0.0
    %102 = vmatpush2.msra.mxu0 0.0
    %103 = vmatprep.subr.mxu0 0.0
    %104 = vmatpush2.msra.mxu0 0.0
    %105 = vmatprep.subr.mxu0 0.0
    %106 = vmatpush2.msra.mxu0 0.0
    %107 = vmatprep.subr.mxu0 0.0
    %108 = vmatpush2.msra.mxu0 0.0
    %109 = vmatprep.subr.mxu0 0.0
    %110 = vmatpush2.msra.mxu0 0.0
    %111 = vmatprep.subr.mxu0 0.0
    %112 = vmatpush2.msra.mxu0 0.0
    %113 = vmatprep.subr.mxu0 0.0
    %114 = vmatpush2.msra.mxu0 0.0
    %115 = vmatprep.subr.mxu0 0.0
    %116 = vmatpush2.msra.mxu0 0.0
    %117 = vmatprep.subr.mxu0 0.0
    %118 = vmatpush2.msra.mxu0 0.0
    %119 = vmatprep.subr.mxu0 0.0
    %120 = vmatpush2.msra.mxu0 0.0
    %121 = vmatprep.subr.mxu0 0.0
    %122 = vmatpush2.msra.mxu0 0.0
    %123 = vmatprep.mubr.f32.mxu0 0.0
    %124 = vmatmul.mubr.f32.gmra.mxu0 %v54
    %v125 = vpop.f32.mrf.mxu0
    %v126 = vadd.f32 %v50, %v125
    %v127 = vpop.f32.mrf.mxu0
    %128 = vmatprep.mubr.f32.mxu0 0.0
    %129 = vmatmul.mubr.f32.gmra.mxu0 %v57
    %v130 = vpop.f32.mrf.mxu0
    %v131 = vadd.f32 %v50, %v130
    %v132 = vpop.f32.mrf.mxu0
    %133 = vdwg.mxu0
    %136 = vrot.lane.b32.xlu0 %v126, 96
    %v137 = vpop.permute.xlu0 %136
    %138 = vrot.lane.b32.xlu0 %v131, 96
    %v139 = vpop.permute.xlu0 %138
    %vm140 = vcmask 130048
    %v141 = vsel %vm140, %v126, 0
    %v143 = vsel %vm140, %v131, 0
    %v145 = vsel %vm140, %v137, 0
    %v147 = vsel %vm140, %v139, 0
    %149 = vmatprep.subr.mxu0 0.0
    %150 = vmatpush1.xpose.msra.mxu0 0.0
    %151 = vmatprep.subr.mxu0 0.0
    %152 = vmatpush1.xpose.msra.mxu0 0.0
    %153 = vmatprep.subr.mxu0 0.0
    %154 = vmatpush1.xpose.msra.mxu0 0.0
    %155 = vmatprep.subr.mxu0 0.0
    %156 = vmatpush1.xpose.msra.mxu0 0.0
    %157 = vmatprep.subr.mxu0 0.0
    %158 = vmatpush1.xpose.msra.mxu0 0.0
    %159 = vmatprep.subr.mxu0 0.0
    %160 = vmatpush1.xpose.msra.mxu0 0.0
    %161 = vmatprep.subr.mxu0 0.0
    %162 = vmatpush1.xpose.msra.mxu0 0.0
    %163 = vmatprep.subr.mxu0 0.0
    %164 = vmatpush1.xpose.msra.mxu0 0.0
    %165 = vmatprep.subr.mxu0 0.0
    %166 = vmatpush1.xpose.msra.mxu0 0.0
    %167 = vmatprep.subr.mxu0 0.0
    %168 = vmatpush1.xpose.msra.mxu0 0.0
    %169 = vmatprep.subr.mxu0 0.0
    %170 = vmatpush1.xpose.msra.mxu0 0.0
    %171 = vmatprep.subr.mxu0 0.0
    %172 = vmatpush1.xpose.msra.mxu0 0.0
    %173 = vmatprep.subr.mxu0 0.0
    %174 = vmatpush1.xpose.msra.mxu0 0.0
    %175 = vmatprep.subr.mxu0 0.0
    %176 = vmatpush1.xpose.msra.mxu0 0.0
    %177 = vmatprep.subr.mxu0 0.0
    %178 = vmatpush1.xpose.msra.mxu0 %v147
    %179 = vmatprep.subr.mxu0 0.0
    %180 = vmatpush1.xpose.msra.mxu0 %v145
    %181 = vmatprep.subr.mxu0 0.0
    %182 = vmatpush2.xpose.msra.mxu0 0.0
    %183 = vmatprep.subr.mxu0 0.0
    %184 = vmatpush2.xpose.msra.mxu0 0.0
    %185 = vmatprep.subr.mxu0 0.0
    %186 = vmatpush2.xpose.msra.mxu0 0.0
    %187 = vmatprep.subr.mxu0 0.0
    %188 = vmatpush2.xpose.msra.mxu0 0.0
    %189 = vmatprep.subr.mxu0 0.0
    %190 = vmatpush2.xpose.msra.mxu0 0.0
    %191 = vmatprep.subr.mxu0 0.0
    %192 = vmatpush2.xpose.msra.mxu0 0.0
    %193 = vmatprep.subr.mxu0 0.0
    %194 = vmatpush2.xpose.msra.mxu0 0.0
    %195 = vmatprep.subr.mxu0 0.0
    %196 = vmatpush2.xpose.msra.mxu0 0.0
    %197 = vmatprep.subr.mxu0 0.0
    %198 = vmatpush2.xpose.msra.mxu0 0.0
    %199 = vmatprep.subr.mxu0 0.0
    %200 = vmatpush2.xpose.msra.mxu0 0.0
    %201 = vmatprep.subr.mxu0 0.0
    %202 = vmatpush2.xpose.msra.mxu0 0.0
    %203 = vmatprep.subr.mxu0 0.0
    %204 = vmatpush2.xpose.msra.mxu0 0.0
    %205 = vmatprep.subr.mxu0 0.0
    %206 = vmatpush2.xpose.msra.mxu0 0.0
    %207 = vmatprep.subr.mxu0 0.0
    %208 = vmatpush2.xpose.msra.mxu0 0.0
    %209 = vmatprep.subr.mxu0 0.0
    %210 = vmatpush2.xpose.msra.mxu0 0.0
    %211 = vmatprep.subr.mxu0 0.0
    %212 = vmatpush2.xpose.msra.mxu0 0.0
    %213 = vmatprep.mubr.f32.mxu0 0.0
    %214 = vmatmul.mubr.f32.gmra.mxu0 %v141
    %v215 = vpop.f32.mrf.mxu0
    %v216 = vadd.f32 %v26, %v215
    %v217 = vpop.f32.mrf.mxu0
    %218 = vmatprep.mubr.f32.mxu0 0.0
    %219 = vmatmul.mubr.f32.gmra.mxu0 %v143
    %v220 = vpop.f32.mrf.mxu0
    %v221 = vadd.f32 %v27, %v220
    %v222 = vpop.f32.mrf.mxu0
    %223 = vdwg.mxu0
    %v224 = vsel %vm140, %v216, -inf
    %225 = vmax.xlane.f32.xlu0 %v224
    %v226 = vpop.xlane.xlu0 %225
    %v227 = vsel %vm140, %v221, -inf
    %228 = vmax.xlane.f32.xlu0 %v227
    %v229 = vpop.xlane.xlu0 %228
    %v230 = vsub.f32 %v216, %v226
    %v231 = vsub.f32 %v221, %v229
    %v232 = vmul.f32 %v230, 1.442695
    %v233 = vpow.pop %v232
    %v234 = vmul.f32 %v231, 1.442695
    %v235 = vpow.pop %v234
    %v236 = vsel %vm140, %v233, 0.0
    %237 = vadd.xlane.f32.xlu0 %v236
    %v238 = vpop.xlane.xlu0 %237
    %v239 = vsel %vm140, %v235, 0.0
    %240 = vadd.xlane.f32.xlu0 %v239
    %v241 = vpop.xlane.xlu0 %240
    %v242 = vrcp.pop %v238
    %v243 = vmul.f32 1.0, %v242
    %v244 = vrcp.pop %v241
    %v245 = vmul.f32 1.0, %v244
    %v246 = vmul.f32 %v233, %v243
    %v247 = vmul.f32 %v235, %v245
    %248 = vrot.lane.b32.xlu0 %v126, 64
    %v249 = vpop.permute.xlu0 %248
    %250 = vrot.lane.b32.xlu0 %v131, 64
    %v251 = vpop.permute.xlu0 %250
    %v255 = vsel %vm140, %v246, 0
    %v258 = vsel %vm140, %v247, 0
    %260 = vmatprep.subr.mxu0 0.0
    %261 = vmatpush1.msra.mxu0 0.0
    %262 = vmatprep.subr.mxu0 0.0
    %263 = vmatpush1.msra.mxu0 0.0
    %264 = vmatprep.subr.mxu0 0.0
    %265 = vmatpush1.msra.mxu0 0.0
    %266 = vmatprep.subr.mxu0 0.0
    %267 = vmatpush1.msra.mxu0 0.0
    %268 = vmatprep.subr.mxu0 0.0
    %269 = vmatpush1.msra.mxu0 0.0
    %270 = vmatprep.subr.mxu0 0.0
    %271 = vmatpush1.msra.mxu0 0.0
    %272 = vmatprep.subr.mxu0 0.0
    %273 = vmatpush1.msra.mxu0 0.0
    %274 = vmatprep.subr.mxu0 0.0
    %275 = vmatpush1.msra.mxu0 0.0
    %276 = vmatprep.subr.mxu0 0.0
    %277 = vmatpush1.msra.mxu0 0.0
    %278 = vmatprep.subr.mxu0 0.0
    %279 = vmatpush1.msra.mxu0 0.0
    %280 = vmatprep.subr.mxu0 0.0
    %281 = vmatpush1.msra.mxu0 0.0
    %282 = vmatprep.subr.mxu0 0.0
    %283 = vmatpush1.msra.mxu0 0.0
    %284 = vmatprep.subr.mxu0 0.0
    %285 = vmatpush1.msra.mxu0 0.0
    %286 = vmatprep.subr.mxu0 0.0
    %287 = vmatpush1.msra.mxu0 0.0
    %288 = vmatprep.subr.mxu0 0.0
    %289 = vmatpush1.msra.mxu0 %v251
    %290 = vmatprep.subr.mxu0 0.0
    %291 = vmatpush1.msra.mxu0 %v249
    %292 = vmatprep.subr.mxu0 0.0
    %293 = vmatpush2.msra.mxu0 0.0
    %294 = vmatprep.subr.mxu0 0.0
    %295 = vmatpush2.msra.mxu0 0.0
    %296 = vmatprep.subr.mxu0 0.0
    %297 = vmatpush2.msra.mxu0 0.0
    %298 = vmatprep.subr.mxu0 0.0
    %299 = vmatpush2.msra.mxu0 0.0
    %300 = vmatprep.subr.mxu0 0.0
    %301 = vmatpush2.msra.mxu0 0.0
    %302 = vmatprep.subr.mxu0 0.0
    %303 = vmatpush2.msra.mxu0 0.0
    %304 = vmatprep.subr.mxu0 0.0
    %305 = vmatpush2.msra.mxu0 0.0
    %306 = vmatprep.subr.mxu0 0.0
    %307 = vmatpush2.msra.mxu0 0.0
    %308 = vmatprep.subr.mxu0 0.0
    %309 = vmatpush2.msra.mxu0 0.0
    %310 = vmatprep.subr.mxu0 0.0
    %311 = vmatpush2.msra.mxu0 0.0
    %312 = vmatprep.subr.mxu0 0.0
    %313 = vmatpush2.msra.mxu0 0.0
    %314 = vmatprep.subr.mxu0 0.0
    %315 = vmatpush2.msra.mxu0 0.0
    %316 = vmatprep.subr.mxu0 0.0
    %317 = vmatpush2.msra.mxu0 0.0
    %318 = vmatprep.subr.mxu0 0.0
    %319 = vmatpush2.msra.mxu0 0.0
    %320 = vmatprep.subr.mxu0 0.0
    %321 = vmatpush2.msra.mxu0 0.0
    %322 = vmatprep.subr.mxu0 0.0
    %323 = vmatpush2.msra.mxu0 0.0
    %324 = vmatprep.mubr.f32.mxu0 0.0
    %325 = vmatmul.mubr.f32.gmra.mxu0 %v255
    %v326 = vpop.f32.mrf.mxu0
    %v327 = vadd.f32 0.0, %v326
    %v328 = vpop.f32.mrf.mxu0
    %329 = vmatprep.mubr.f32.mxu0 0.0
    %330 = vmatmul.mubr.f32.gmra.mxu0 %v258
    %v331 = vpop.f32.mrf.mxu0
    %v332 = vadd.f32 0.0, %v331
    %v333 = vpop.f32.mrf.mxu0
    %334 = vdwg.mxu0
    %335 = vrot.lane.b32.xlu0 %v126, 112
    %v336 = vpop.permute.xlu0 %335
    %337 = vrot.lane.b32.xlu0 %v131, 112
    %v338 = vpop.permute.xlu0 %337
    %339 = vrot.lane.b32.xlu0 %v126, 80
    %v340 = vpop.permute.xlu0 %339
    %341 = vrot.lane.b32.xlu0 %v131, 80
    %v342 = vpop.permute.xlu0 %341
    %v343 = vsel %vm140, %v336, 0
    %v345 = vsel %vm140, %v338, 0
    %v347 = vsel %vm140, %v340, 0
    %v349 = vsel %vm140, %v342, 0
    %351 = vmatprep.subr.mxu0 0.0
    %352 = vmatpush1.xpose.msra.mxu0 0.0
    %353 = vmatprep.subr.mxu0 0.0
    %354 = vmatpush1.xpose.msra.mxu0 0.0
    %355 = vmatprep.subr.mxu0 0.0
    %356 = vmatpush1.xpose.msra.mxu0 0.0
    %357 = vmatprep.subr.mxu0 0.0
    %358 = vmatpush1.xpose.msra.mxu0 0.0
    %359 = vmatprep.subr.mxu0 0.0
    %360 = vmatpush1.xpose.msra.mxu0 0.0
    %361 = vmatprep.subr.mxu0 0.0
    %362 = vmatpush1.xpose.msra.mxu0 0.0
    %363 = vmatprep.subr.mxu0 0.0
    %364 = vmatpush1.xpose.msra.mxu0 0.0
    %365 = vmatprep.subr.mxu0 0.0
    %366 = vmatpush1.xpose.msra.mxu0 0.0
    %367 = vmatprep.subr.mxu0 0.0
    %368 = vmatpush1.xpose.msra.mxu0 0.0
    %369 = vmatprep.subr.mxu0 0.0
    %370 = vmatpush1.xpose.msra.mxu0 0.0
    %371 = vmatprep.subr.mxu0 0.0
    %372 = vmatpush1.xpose.msra.mxu0 0.0
    %373 = vmatprep.subr.mxu0 0.0
    %374 = vmatpush1.xpose.msra.mxu0 0.0
    %375 = vmatprep.subr.mxu0 0.0
    %376 = vmatpush1.xpose.msra.mxu0 0.0
    %377 = vmatprep.subr.mxu0 0.0
    %378 = vmatpush1.xpose.msra.mxu0 0.0
    %379 = vmatprep.subr.mxu0 0.0
    %380 = vmatpush1.xpose.msra.mxu0 %v349
    %381 = vmatprep.subr.mxu0 0.0
    %382 = vmatpush1.xpose.msra.mxu0 %v347
    %383 = vmatprep.subr.mxu0 0.0
    %384 = vmatpush2.xpose.msra.mxu0 0.0
    %385 = vmatprep.subr.mxu0 0.0
    %386 = vmatpush2.xpose.msra.mxu0 0.0
    %387 = vmatprep.subr.mxu0 0.0
    %388 = vmatpush2.xpose.msra.mxu0 0.0
    %389 = vmatprep.subr.mxu0 0.0
    %390 = vmatpush2.xpose.msra.mxu0 0.0
    %391 = vmatprep.subr.mxu0 0.0
    %392 = vmatpush2.xpose.msra.mxu0 0.0
    %393 = vmatprep.subr.mxu0 0.0
    %394 = vmatpush2.xpose.msra.mxu0 0.0
    %395 = vmatprep.subr.mxu0 0.0
    %396 = vmatpush2.xpose.msra.mxu0 0.0
    %397 = vmatprep.subr.mxu0 0.0
    %398 = vmatpush2.xpose.msra.mxu0 0.0
    %399 = vmatprep.subr.mxu0 0.0
    %400 = vmatpush2.xpose.msra.mxu0 0.0
    %401 = vmatprep.subr.mxu0 0.0
    %402 = vmatpush2.xpose.msra.mxu0 0.0
    %403 = vmatprep.subr.mxu0 0.0
    %404 = vmatpush2.xpose.msra.mxu0 0.0
    %405 = vmatprep.subr.mxu0 0.0
    %406 = vmatpush2.xpose.msra.mxu0 0.0
    %407 = vmatprep.subr.mxu0 0.0
    %408 = vmatpush2.xpose.msra.mxu0 0.0
    %409 = vmatprep.subr.mxu0 0.0
    %410 = vmatpush2.xpose.msra.mxu0 0.0
    %411 = vmatprep.subr.mxu0 0.0
    %412 = vmatpush2.xpose.msra.mxu0 0.0
    %413 = vmatprep.subr.mxu0 0.0
    %414 = vmatpush2.xpose.msra.mxu0 0.0
    %415 = vmatprep.mubr.f32.mxu0 0.0
    %416 = vmatmul.mubr.f32.gmra.mxu0 %v343
    %v417 = vpop.f32.mrf.mxu0
    %v418 = vadd.f32 %v26, %v417
    %v419 = vpop.f32.mrf.mxu0
    %420 = vmatprep.mubr.f32.mxu0 0.0
    %421 = vmatmul.mubr.f32.gmra.mxu0 %v345
    %v422 = vpop.f32.mrf.mxu0
    %v423 = vadd.f32 %v27, %v422
    %v424 = vpop.f32.mrf.mxu0
    %425 = vdwg.mxu0
    %v426 = vsel %vm140, %v418, -inf
    %427 = vmax.xlane.f32.xlu0 %v426
    %v428 = vpop.xlane.xlu0 %427
    %v429 = vsel %vm140, %v423, -inf
    %430 = vmax.xlane.f32.xlu0 %v429
    %v431 = vpop.xlane.xlu0 %430
    %v432 = vsub.f32 %v418, %v428
    %v433 = vsub.f32 %v423, %v431
    %v434 = vmul.f32 %v432, 1.442695
    %v435 = vpow.pop %v434
    %v436 = vmul.f32 %v433, 1.442695
    %v437 = vpow.pop %v436
    %v438 = vsel %vm140, %v435, 0.0
    %439 = vadd.xlane.f32.xlu0 %v438
    %v440 = vpop.xlane.xlu0 %439
    %v441 = vsel %vm140, %v437, 0.0
    %442 = vadd.xlane.f32.xlu0 %v441
    %v443 = vpop.xlane.xlu0 %442
    %v444 = vrcp.pop %v440
    %v445 = vmul.f32 1.0, %v444
    %v446 = vrcp.pop %v443
    %v447 = vmul.f32 1.0, %v446
    %v448 = vmul.f32 %v435, %v445
    %v449 = vmul.f32 %v437, %v447
    %450 = vrot.lane.b32.xlu0 %v126, 48
    %v451 = vpop.permute.xlu0 %450
    %452 = vrot.lane.b32.xlu0 %v131, 48
    %v453 = vpop.permute.xlu0 %452
    %v457 = vsel %vm140, %v448, 0
    %v460 = vsel %vm140, %v449, 0
    %462 = vmatprep.subr.mxu0 0.0
    %463 = vmatpush1.msra.mxu0 0.0
    %464 = vmatprep.subr.mxu0 0.0
    %465 = vmatpush1.msra.mxu0 0.0
    %466 = vmatprep.subr.mxu0 0.0
    %467 = vmatpush1.msra.mxu0 0.0
    %468 = vmatprep.subr.mxu0 0.0
    %469 = vmatpush1.msra.mxu0 0.0
    %470 = vmatprep.subr.mxu0 0.0
    %471 = vmatpush1.msra.mxu0 0.0
    %472 = vmatprep.subr.mxu0 0.0
    %473 = vmatpush1.msra.mxu0 0.0
    %474 = vmatprep.subr.mxu0 0.0
    %475 = vmatpush1.msra.mxu0 0.0
    %476 = vmatprep.subr.mxu0 0.0
    %477 = vmatpush1.msra.mxu0 0.0
    %478 = vmatprep.subr.mxu0 0.0
    %479 = vmatpush1.msra.mxu0 0.0
    %480 = vmatprep.subr.mxu0 0.0
    %481 = vmatpush1.msra.mxu0 0.0
    %482 = vmatprep.subr.mxu0 0.0
    %483 = vmatpush1.msra.mxu0 0.0
    %484 = vmatprep.subr.mxu0 0.0
    %485 = vmatpush1.msra.mxu0 0.0
    %486 = vmatprep.subr.mxu0 0.0
    %487 = vmatpush1.msra.mxu0 0.0
    %488 = vmatprep.subr.mxu0 0.0
    %489 = vmatpush1.msra.mxu0 0.0
    %490 = vmatprep.subr.mxu0 0.0
    %491 = vmatpush1.msra.mxu0 %v453
    %492 = vmatprep.subr.mxu0 0.0
    %493 = vmatpush1.msra.mxu0 %v451
    %494 = vmatprep.subr.mxu0 0.0
    %495 = vmatpush2.msra.mxu0 0.0
    %496 = vmatprep.subr.mxu0 0.0
    %497 = vmatpush2.msra.mxu0 0.0
    %498 = vmatprep.subr.mxu0 0.0
    %499 = vmatpush2.msra.mxu0 0.0
    %500 = vmatprep.subr.mxu0 0.0
    %501 = vmatpush2.msra.mxu0 0.0
    %502 = vmatprep.subr.mxu0 0.0
    %503 = vmatpush2.msra.mxu0 0.0
    %504 = vmatprep.subr.mxu0 0.0
    %505 = vmatpush2.msra.mxu0 0.0
    %506 = vmatprep.subr.mxu0 0.0
    %507 = vmatpush2.msra.mxu0 0.0
    %508 = vmatprep.subr.mxu0 0.0
    %509 = vmatpush2.msra.mxu0 0.0
    %510 = vmatprep.subr.mxu0 0.0
    %511 = vmatpush2.msra.mxu0 0.0
    %512 = vmatprep.subr.mxu0 0.0
    %513 = vmatpush2.msra.mxu0 0.0
    %514 = vmatprep.subr.mxu0 0.0
    %515 = vmatpush2.msra.mxu0 0.0
    %516 = vmatprep.subr.mxu0 0.0
    %517 = vmatpush2.msra.mxu0 0.0
    %518 = vmatprep.subr.mxu0 0.0
    %519 = vmatpush2.msra.mxu0 0.0
    %520 = vmatprep.subr.mxu0 0.0
    %521 = vmatpush2.msra.mxu0 0.0
    %522 = vmatprep.subr.mxu0 0.0
    %523 = vmatpush2.msra.mxu0 0.0
    %524 = vmatprep.subr.mxu0 0.0
    %525 = vmatpush2.msra.mxu0 0.0
    %526 = vmatprep.mubr.f32.mxu0 0.0
    %527 = vmatmul.mubr.f32.gmra.mxu0 %v457
    %v528 = vpop.f32.mrf.mxu0
    %v529 = vadd.f32 0.0, %v528
    %v530 = vpop.f32.mrf.mxu0
    %531 = vmatprep.mubr.f32.mxu0 0.0
    %532 = vmatmul.mubr.f32.gmra.mxu0 %v460
    %v533 = vpop.f32.mrf.mxu0
    %v534 = vadd.f32 0.0, %v533
    %v535 = vpop.f32.mrf.mxu0
    %536 = vdwg.mxu0
    %v538 = vsel %vm140, %v529, 0
    %v541 = vsel %vm140, %v534, 0
    %543 = vmatprep.subr.mxu0 0.0
    %544 = vmatpush1.msra.mxu0 0.0
    %545 = vmatprep.subr.mxu0 0.0
    %546 = vmatpush1.msra.mxu0 0.0
    %547 = vmatprep.subr.mxu0 0.0
    %548 = vmatpush1.msra.mxu0 0.0
    %549 = vmatprep.subr.mxu0 0.0
    %550 = vmatpush1.msra.mxu0 0.0
    %551 = vmatprep.subr.mxu0 0.0
    %552 = vmatpush1.msra.mxu0 0.0
    %553 = vmatprep.subr.mxu0 0.0
    %554 = vmatpush1.msra.mxu0 0.0
    %555 = vmatprep.subr.mxu0 0.0
    %556 = vmatpush1.msra.mxu0 0.0
    %557 = vmatprep.subr.mxu0 0.0
    %558 = vmatpush1.msra.mxu0 0.0
    %559 = vmatprep.subr.mxu0 0.0
    %560 = vmatpush1.msra.mxu0 0.0
    %561 = vmatprep.subr.mxu0 0.0
    %562 = vmatpush1.msra.mxu0 0.0
    %563 = vmatprep.subr.mxu0 0.0
    %564 = vmatpush1.msra.mxu0 0.0
    %565 = vmatprep.subr.mxu0 0.0
    %566 = vmatpush1.msra.mxu0 0.0
    %567 = vmatprep.subr.mxu0 0.0
    %568 = vmatpush1.msra.mxu0 0.0
    %569 = vmatprep.subr.mxu0 0.0
    %570 = vmatpush1.msra.mxu0 0.0
    %571 = vmatprep.subr.mxu0 0.0
    %572 = vmatpush1.msra.mxu0 %v31
    %573 = vmatprep.subr.mxu0 0.0
    %574 = vmatpush1.msra.mxu0 %v30
    %575 = vmatprep.subr.mxu0 0.0
    %576 = vmatpush2.msra.mxu0 0.0
    %577 = vmatprep.subr.mxu0 0.0
    %578 = vmatpush2.msra.mxu0 0.0
    %579 = vmatprep.subr.mxu0 0.0
    %580 = vmatpush2.msra.mxu0 0.0
    %581 = vmatprep.subr.mxu0 0.0
    %582 = vmatpush2.msra.mxu0 0.0
    %583 = vmatprep.subr.mxu0 0.0
    %584 = vmatpush2.msra.mxu0 0.0
    %585 = vmatprep.subr.mxu0 0.0
    %586 = vmatpush2.msra.mxu0 0.0
    %587 = vmatprep.subr.mxu0 0.0
    %588 = vmatpush2.msra.mxu0 0.0
    %589 = vmatprep.subr.mxu0 0.0
    %590 = vmatpush2.msra.mxu0 0.0
    %591 = vmatprep.subr.mxu0 0.0
    %592 = vmatpush2.msra.mxu0 0.0
    %593 = vmatprep.subr.mxu0 0.0
    %594 = vmatpush2.msra.mxu0 0.0
    %595 = vmatprep.subr.mxu0 0.0
    %596 = vmatpush2.msra.mxu0 0.0
    %597 = vmatprep.subr.mxu0 0.0
    %598 = vmatpush2.msra.mxu0 0.0
    %599 = vmatprep.subr.mxu0 0.0
    %600 = vmatpush2.msra.mxu0 0.0
    %601 = vmatprep.subr.mxu0 0.0
    %602 = vmatpush2.msra.mxu0 0.0
    %603 = vmatprep.subr.mxu0 0.0
    %604 = vmatpush2.msra.mxu0 0.0
    %605 = vmatprep.subr.mxu0 0.0
    %606 = vmatpush2.msra.mxu0 0.0
    %607 = vmatprep.mubr.f32.mxu0 0.0
    %608 = vmatmul.mubr.f32.gmra.mxu0 %v538
    %v609 = vpop.f32.mrf.mxu0
    %v610 = vadd.f32 0.0, %v609
    %v611 = vpop.f32.mrf.mxu0
    %612 = vmatprep.mubr.f32.mxu0 0.0
    %613 = vmatmul.mubr.f32.gmra.mxu0 %v541
    %v614 = vpop.f32.mrf.mxu0
    %v615 = vadd.f32 0.0, %v614
    %v616 = vpop.f32.mrf.mxu0
    %617 = vdwg.mxu0
    %v619 = vsel %vm140, %v327, 0
    %v622 = vsel %vm140, %v332, 0
    %624 = vmatprep.subr.mxu0 0.0
    %625 = vmatpush1.msra.mxu0 0.0
    %626 = vmatprep.subr.mxu0 0.0
    %627 = vmatpush1.msra.mxu0 0.0
    %628 = vmatprep.subr.mxu0 0.0
    %629 = vmatpush1.msra.mxu0 0.0
    %630 = vmatprep.subr.mxu0 0.0
    %631 = vmatpush1.msra.mxu0 0.0
    %632 = vmatprep.subr.mxu0 0.0
    %633 = vmatpush1.msra.mxu0 0.0
    %634 = vmatprep.subr.mxu0 0.0
    %635 = vmatpush1.msra.mxu0 0.0
    %636 = vmatprep.subr.mxu0 0.0
    %637 = vmatpush1.msra.mxu0 0.0
    %638 = vmatprep.subr.mxu0 0.0
    %639 = vmatpush1.msra.mxu0 0.0
    %640 = vmatprep.subr.mxu0 0.0
    %641 = vmatpush1.msra.mxu0 0.0
    %642 = vmatprep.subr.mxu0 0.0
    %643 = vmatpush1.msra.mxu0 0.0
    %644 = vmatprep.subr.mxu0 0.0
    %645 = vmatpush1.msra.mxu0 0.0
    %646 = vmatprep.subr.mxu0 0.0
    %647 = vmatpush1.msra.mxu0 0.0
    %648 = vmatprep.subr.mxu0 0.0
    %649 = vmatpush1.msra.mxu0 0.0
    %650 = vmatprep.subr.mxu0 0.0
    %651 = vmatpush1.msra.mxu0 0.0
    %652 = vmatprep.subr.mxu0 0.0
    %653 = vmatpush1.msra.mxu0 %v29
    %654 = vmatprep.subr.mxu0 0.0
    %655 = vmatpush1.msra.mxu0 %v28
    %656 = vmatprep.subr.mxu0 0.0
    %657 = vmatpush2.msra.mxu0 0.0
    %658 = vmatprep.subr.mxu0 0.0
    %659 = vmatpush2.msra.mxu0 0.0
    %660 = vmatprep.subr.mxu0 0.0
    %661 = vmatpush2.msra.mxu0 0.0
    %662 = vmatprep.subr.mxu0 0.0
    %663 = vmatpush2.msra.mxu0 0.0
    %664 = vmatprep.subr.mxu0 0.0
    %665 = vmatpush2.msra.mxu0 0.0
    %666 = vmatprep.subr.mxu0 0.0
    %667 = vmatpush2.msra.mxu0 0.0
    %668 = vmatprep.subr.mxu0 0.0
    %669 = vmatpush2.msra.mxu0 0.0
    %670 = vmatprep.subr.mxu0 0.0
    %671 = vmatpush2.msra.mxu0 0.0
    %672 = vmatprep.subr.mxu0 0.0
    %673 = vmatpush2.msra.mxu0 0.0
    %674 = vmatprep.subr.mxu0 0.0
    %675 = vmatpush2.msra.mxu0 0.0
    %676 = vmatprep.subr.mxu0 0.0
    %677 = vmatpush2.msra.mxu0 0.0
    %678 = vmatprep.subr.mxu0 0.0
    %679 = vmatpush2.msra.mxu0 0.0
    %680 = vmatprep.subr.mxu0 0.0
    %681 = vmatpush2.msra.mxu0 0.0
    %682 = vmatprep.subr.mxu0 0.0
    %683 = vmatpush2.msra.mxu0 0.0
    %684 = vmatprep.subr.mxu0 0.0
    %685 = vmatpush2.msra.mxu0 0.0
    %686 = vmatprep.subr.mxu0 0.0
    %687 = vmatpush2.msra.mxu0 0.0
    %688 = vmatprep.mubr.f32.mxu0 0.0
    %689 = vmatmul.mubr.f32.gmra.mxu0 %v619
    %v690 = vpop.f32.mrf.mxu0
    %v691 = vadd.f32 %v610, %v690
    %v692 = vpop.f32.mrf.mxu0
    %693 = vmatprep.mubr.f32.mxu0 0.0
    %694 = vmatmul.mubr.f32.gmra.mxu0 %v622
    %v695 = vpop.f32.mrf.mxu0
    %v696 = vadd.f32 %v615, %v695
    %v697 = vpop.f32.mrf.mxu0
    %698 = vdwg.mxu0
    %v699 = vlaneseq
    %v700 = vshrl.u32 %v699, 7
    %v701 = vsub.s32 0, %v700
    %v702 = vrot.slane %v40, %v701
    %v703 = vadd.f32 %v691, %v702
    %v704 = vadd.f32 %v696, %v702
    %v705 = vadd.f32 %v703, %v24
    %v706 = vadd.f32 %v704, %v25
    %v707 = vsel %vm52, %v705, 0.0
    %708 = vadd.xlane.f32.xlu0 %v707
    %v709 = vpop.xlane.xlu0 %708
    %v710 = vsel %vm52, %v706, 0.0
    %711 = vadd.xlane.f32.xlu0 %v710
    %v712 = vpop.xlane.xlu0 %711
    %v713 = vrcp.pop 32.0
    %v714 = vmul.f32 %v709, %v713
    %v715 = vmul.f32 %v712, %v713
    %v716 = vsub.f32 %v705, %v714
    %v717 = vsub.f32 %v706, %v715
    %v718 = vmul.f32 %v716, %v716
    %v719 = vmul.f32 %v717, %v717
    %v720 = vsel %vm52, %v718, 0.0
    %721 = vadd.xlane.f32.xlu0 %v720
    %v722 = vpop.xlane.xlu0 %721
    %v723 = vsel %vm52, %v719, 0.0
    %724 = vadd.xlane.f32.xlu0 %v723
    %v725 = vpop.xlane.xlu0 %724
    %v726 = vmul.f32 %v722, %v713
    %v727 = vmul.f32 %v725, %v713
    %v728 = vadd.f32 %v726, 1e-12
    %v729 = vadd.f32 %v727, 1e-12
    %v730 = vrsqrt.pop %v728
    %v731 = vrsqrt.pop %v729
    %v732 = vmul.f32 %v716, %v730
    %v733 = vmul.f32 %v717, %v731
    %v734 = vlaneseq
    %v735 = vshrl.u32 %v734, 7
    %v736 = vsub.s32 3, %v735
    %v737 = vrot.slane %v40, %v736
    %v738 = vmul.f32 %v732, %v737
    %v739 = vmul.f32 %v733, %v737
    %v740 = vlaneseq
    %v741 = vshrl.u32 %v740, 7
    %v742 = vsub.s32 4, %v741
    %v743 = vrot.slane %v40, %v742
    %v744 = vadd.f32 %v738, %v743
    %v745 = vadd.f32 %v739, %v743
    %v746 = vlaneseq
    %v747 = vshrl.u32 %v746, 7
    %v748 = vsub.s32 1, %v747
    %v749 = vrot.slane %v40, %v748
    %v751 = vsel %vm52, %v744, 0
    %v754 = vsel %vm52, %v745, 0
    %756 = vmatprep.subr.mxu0 0.0
    %757 = vmatpush1.msra.mxu0 0.0
    %758 = vmatprep.subr.mxu0 0.0
    %759 = vmatpush1.msra.mxu0 0.0
    %760 = vmatprep.subr.mxu0 0.0
    %761 = vmatpush1.msra.mxu0 0.0
    %762 = vmatprep.subr.mxu0 0.0
    %763 = vmatpush1.msra.mxu0 0.0
    %764 = vmatprep.subr.mxu0 0.0
    %765 = vmatpush1.msra.mxu0 0.0
    %766 = vmatprep.subr.mxu0 0.0
    %767 = vmatpush1.msra.mxu0 0.0
    %768 = vmatprep.subr.mxu0 0.0
    %769 = vmatpush1.msra.mxu0 0.0
    %770 = vmatprep.subr.mxu0 0.0
    %771 = vmatpush1.msra.mxu0 0.0
    %772 = vmatprep.subr.mxu0 0.0
    %773 = vmatpush1.msra.mxu0 0.0
    %774 = vmatprep.subr.mxu0 0.0
    %775 = vmatpush1.msra.mxu0 0.0
    %776 = vmatprep.subr.mxu0 0.0
    %777 = vmatpush1.msra.mxu0 0.0
    %778 = vmatprep.subr.mxu0 0.0
    %779 = vmatpush1.msra.mxu0 0.0
    %780 = vmatprep.subr.mxu0 0.0
    %781 = vmatpush1.msra.mxu0 %v35
    %782 = vmatprep.subr.mxu0 0.0
    %783 = vmatpush1.msra.mxu0 %v34
    %784 = vmatprep.subr.mxu0 0.0
    %785 = vmatpush1.msra.mxu0 %v33
    %786 = vmatprep.subr.mxu0 0.0
    %787 = vmatpush1.msra.mxu0 %v32
    %788 = vmatprep.subr.mxu0 0.0
    %789 = vmatpush2.msra.mxu0 0.0
    %790 = vmatprep.subr.mxu0 0.0
    %791 = vmatpush2.msra.mxu0 0.0
    %792 = vmatprep.subr.mxu0 0.0
    %793 = vmatpush2.msra.mxu0 0.0
    %794 = vmatprep.subr.mxu0 0.0
    %795 = vmatpush2.msra.mxu0 0.0
    %796 = vmatprep.subr.mxu0 0.0
    %797 = vmatpush2.msra.mxu0 0.0
    %798 = vmatprep.subr.mxu0 0.0
    %799 = vmatpush2.msra.mxu0 0.0
    %800 = vmatprep.subr.mxu0 0.0
    %801 = vmatpush2.msra.mxu0 0.0
    %802 = vmatprep.subr.mxu0 0.0
    %803 = vmatpush2.msra.mxu0 0.0
    %804 = vmatprep.subr.mxu0 0.0
    %805 = vmatpush2.msra.mxu0 0.0
    %806 = vmatprep.subr.mxu0 0.0
    %807 = vmatpush2.msra.mxu0 0.0
    %808 = vmatprep.subr.mxu0 0.0
    %809 = vmatpush2.msra.mxu0 0.0
    %810 = vmatprep.subr.mxu0 0.0
    %811 = vmatpush2.msra.mxu0 0.0
    %812 = vmatprep.subr.mxu0 0.0
    %813 = vmatpush2.msra.mxu0 0.0
    %814 = vmatprep.subr.mxu0 0.0
    %815 = vmatpush2.msra.mxu0 0.0
    %816 = vmatprep.subr.mxu0 0.0
    %817 = vmatpush2.msra.mxu0 0.0
    %818 = vmatprep.subr.mxu0 0.0
    %819 = vmatpush2.msra.mxu0 0.0
    %820 = vmatprep.mubr.f32.mxu0 0.0
    %821 = vmatmul.mubr.f32.gmra.mxu0 %v751
    %v822 = vpop.f32.mrf.mxu0
    %v823 = vadd.f32 %v749, %v822
    %v824 = vpop.f32.mrf.mxu0
    %825 = vmatprep.mubr.f32.mxu0 0.0
    %826 = vmatmul.mubr.f32.gmra.mxu0 %v754
    %v827 = vpop.f32.mrf.mxu0
    %v828 = vadd.f32 %v749, %v827
    %v829 = vpop.f32.mrf.mxu0
    %830 = vdwg.mxu0
    %v831 = vmul.f32 %v823, 0.5
    %v832 = vmul.f32 %v828, 0.5
    %v833 = vrcp.pop 1.4142135
    %v834 = vmul.f32 %v823, %v833
    %v835 = vmul.f32 %v828, %v833
    %v836 = verf.f32.pop %v834
    %v837 = verf.f32.pop %v835
    %v838 = vadd.f32 %v836, 1.0
    %v839 = vadd.f32 %v837, 1.0
    %v840 = vmul.f32 %v831, %v838
    %v841 = vmul.f32 %v832, %v839
    %v842 = vlaneseq
    %v843 = vshrl.u32 %v842, 7
    %v844 = vsub.s32 2, %v843
    %v845 = vrot.slane %v40, %v844
    %v847 = vsel %vm52, %v840, 0
    %v850 = vsel %vm52, %v841, 0
    %852 = vmatprep.subr.mxu0 0.0
    %853 = vmatpush1.msra.mxu0 0.0
    %854 = vmatprep.subr.mxu0 0.0
    %855 = vmatpush1.msra.mxu0 0.0
    %856 = vmatprep.subr.mxu0 0.0
    %857 = vmatpush1.msra.mxu0 0.0
    %858 = vmatprep.subr.mxu0 0.0
    %859 = vmatpush1.msra.mxu0 0.0
    %860 = vmatprep.subr.mxu0 0.0
    %861 = vmatpush1.msra.mxu0 0.0
    %862 = vmatprep.subr.mxu0 0.0
    %863 = vmatpush1.msra.mxu0 0.0
    %864 = vmatprep.subr.mxu0 0.0
    %865 = vmatpush1.msra.mxu0 0.0
    %866 = vmatprep.subr.mxu0 0.0
    %867 = vmatpush1.msra.mxu0 0.0
    %868 = vmatprep.subr.mxu0 0.0
    %869 = vmatpush1.msra.mxu0 0.0
    %870 = vmatprep.subr.mxu0 0.0
    %871 = vmatpush1.msra.mxu0 0.0
    %872 = vmatprep.subr.mxu0 0.0
    %873 = vmatpush1.msra.mxu0 0.0
    %874 = vmatprep.subr.mxu0 0.0
    %875 = vmatpush1.msra.mxu0 0.0
    %876 = vmatprep.subr.mxu0 0.0
    %877 = vmatpush1.msra.mxu0 %v39
    %878 = vmatprep.subr.mxu0 0.0
    %879 = vmatpush1.msra.mxu0 %v38
    %880 = vmatprep.subr.mxu0 0.0
    %881 = vmatpush1.msra.mxu0 %v37
    %882 = vmatprep.subr.mxu0 0.0
    %883 = vmatpush1.msra.mxu0 %v36
    %884 = vmatprep.subr.mxu0 0.0
    %885 = vmatpush2.msra.mxu0 0.0
    %886 = vmatprep.subr.mxu0 0.0
    %887 = vmatpush2.msra.mxu0 0.0
    %888 = vmatprep.subr.mxu0 0.0
    %889 = vmatpush2.msra.mxu0 0.0
    %890 = vmatprep.subr.mxu0 0.0
    %891 = vmatpush2.msra.mxu0 0.0
    %892 = vmatprep.subr.mxu0 0.0
    %893 = vmatpush2.msra.mxu0 0.0
    %894 = vmatprep.subr.mxu0 0.0
    %895 = vmatpush2.msra.mxu0 0.0
    %896 = vmatprep.subr.mxu0 0.0
    %897 = vmatpush2.msra.mxu0 0.0
    %898 = vmatprep.subr.mxu0 0.0
    %899 = vmatpush2.msra.mxu0 0.0
    %900 = vmatprep.subr.mxu0 0.0
    %901 = vmatpush2.msra.mxu0 0.0
    %902 = vmatprep.subr.mxu0 0.0
    %903 = vmatpush2.msra.mxu0 0.0
    %904 = vmatprep.subr.mxu0 0.0
    %905 = vmatpush2.msra.mxu0 0.0
    %906 = vmatprep.subr.mxu0 0.0
    %907 = vmatpush2.msra.mxu0 0.0
    %908 = vmatprep.subr.mxu0 0.0
    %909 = vmatpush2.msra.mxu0 0.0
    %910 = vmatprep.subr.mxu0 0.0
    %911 = vmatpush2.msra.mxu0 0.0
    %912 = vmatprep.subr.mxu0 0.0
    %913 = vmatpush2.msra.mxu0 0.0
    %914 = vmatprep.subr.mxu0 0.0
    %915 = vmatpush2.msra.mxu0 0.0
    %916 = vmatprep.mubr.f32.mxu0 0.0
    %917 = vmatmul.mubr.f32.gmra.mxu0 %v847
    %v918 = vpop.f32.mrf.mxu0
    %v919 = vadd.f32 %v845, %v918
    %v920 = vpop.f32.mrf.mxu0
    %921 = vmatprep.mubr.f32.mxu0 0.0
    %922 = vmatmul.mubr.f32.gmra.mxu0 %v850
    %v923 = vpop.f32.mrf.mxu0
    %v924 = vadd.f32 %v845, %v923
    %v925 = vpop.f32.mrf.mxu0
    %926 = vdwg.mxu0
    %v927 = vadd.f32 %v919, %v744
    %v928 = vadd.f32 %v924, %v745
    %v929 = vsel %vm52, %v927, 0.0
    %930 = vadd.xlane.f32.xlu0 %v929
    %v931 = vpop.xlane.xlu0 %930
    %v932 = vsel %vm52, %v928, 0.0
    %933 = vadd.xlane.f32.xlu0 %v932
    %v934 = vpop.xlane.xlu0 %933
    %v935 = vmul.f32 %v931, %v713
    %v936 = vmul.f32 %v934, %v713
    %v937 = vsub.f32 %v927, %v935
    %v938 = vsub.f32 %v928, %v936
    %v939 = vmul.f32 %v937, %v937
    %v940 = vmul.f32 %v938, %v938
    %v941 = vsel %vm52, %v939, 0.0
    %942 = vadd.xlane.f32.xlu0 %v941
    %v943 = vpop.xlane.xlu0 %942
    %v944 = vsel %vm52, %v940, 0.0
    %945 = vadd.xlane.f32.xlu0 %v944
    %v946 = vpop.xlane.xlu0 %945
    %v947 = vmul.f32 %v943, %v713
    %v948 = vmul.f32 %v946, %v713
    %v949 = vadd.f32 %v947, 1e-12
    %v950 = vadd.f32 %v948, 1e-12
    %v951 = vrsqrt.pop %v949
    %v952 = vrsqrt.pop %v950
    %v953 = vmul.f32 %v937, %v951
    %v954 = vmul.f32 %v938, %v952
    %v955 = vlaneseq
    %v956 = vshrl.u32 %v955, 7
    %v957 = vsub.s32 5, %v956
    %v958 = vrot.slane %v40, %v957
    %v959 = vmul.f32 %v953, %v958
    %v960 = vmul.f32 %v954, %v958
    %v961 = vlaneseq
    %v962 = vshrl.u32 %v961, 7
    %v963 = vsub.s32 6, %v962
    %v964 = vrot.slane %v40, %v963
    %v965 = vadd.f32 %v959, %v964
    %v966 = vadd.f32 %v960, %v964
    %967 = vst.msk [vmem:[#allocation2] sm:$0xff] %vm52, %v965
    %968 = vst.msk [vmem:[#allocation2 + $0x8] sm:$0xff] %vm52, %v966
    // Predicated region
    $region26: #{tpu_custom_call.1} parent=1 // pred_check
      _
    $region27: #{tpu_custom_call.1} parent=1 // pred_check_branch
      %970 = sbr.rel (0) target = $region29
    $region28: #{tpu_custom_call.1} parent=1 // pred_region
      %s972 = ssub.s32 256, 256
      %973 = vsyncadd [#allocation3], %s972
      %s974 = sshll.u32 [#allocation2], 4
      %s975 = int_to_ptr.vmem [resolvable:$true] %s974
      %980 = dma.vmem_to_hbm [thread:$0]  %s975, 256, %s6, [#allocation3], 128, 128, 8
    $region29: #{tpu_custom_call.1} parent=1 // pred_fallthru
      _
    // Predicated region
    $region30: #{tpu_custom_call.1} parent=1 // pred_check
      _
    $region31: #{tpu_custom_call.1} parent=1 // pred_check_branch
      %982 = sbr.rel (0) target = $region33
    $region32: #{tpu_custom_call.1} parent=1 // pred_region
      %983 = dma.done [#allocation3], 256
    $region33: #{tpu_custom_call.1} parent=1 // pred_fallthru
      _
    %984 = vsyncpa [#allocation3], 1

</llo_original>
